<compile_context>
chip_gen: v6e
topology: v6e:2x2x1
jax: 0.10.0
libtpu: 0.0.40
codegen_flags: <defaults>
</compile_context>

<pallas_src>
import math
import numpy as np
import jax
import jax.numpy as jnp
from jax.experimental import pallas as pl
from jax.experimental.pallas import tpu as pltpu

_TWO_PI = 2.0 * math.pi
_INV_TWO_PI = 1.0 / _TWO_PI


def _round_up(x, m):
    return ((x + m - 1) // m) * m


def _phase_vocoder_kernel(r0_ref, i0_ref, r1_ref, i1_ref,
                          pa_ref, alpha_ref,
                          out_re_ref, out_im_ref,
                          carry_ref, prev_ref):
    """One (batch, freq-tile, time-tile) block. Time tiles run sequentially
    (innermost 'arbitrary' grid axis); carry_ref holds the running phase
    cumsum, prev_ref the previous tile's last raw phase (for the shift-by-1)."""
    t_idx = pl.program_id(2)

    r0 = r0_ref[0]            # (F_t, T_t) real part of frame floor(t*rate)
    i0 = i0_ref[0]            # (F_t, T_t) imag part of frame floor(t*rate)
    r1 = r1_ref[0]            # (F_t, T_t) real part of frame floor(t*rate)+1
    i1 = i1_ref[0]            # (F_t, T_t) imag part of frame floor(t*rate)+1
    pa = pa_ref[...]          # (F_t, 1)   phase advance per hop
    alpha = alpha_ref[...]    # (1, T_t)   fractional part of t*rate

    angle0 = jnp.arctan2(i0, r0)
    angle1 = jnp.arctan2(i1, r1)

    # Magnitudes via EUP rsqrt (frees VPU cycles vs. sqrt); eps keeps 0 -> 0.
    s0 = r0 * r0 + i0 * i0
    s1 = r1 * r1 + i1 * i1
    norm0 = s0 * jax.lax.rsqrt(s0 + 1e-30)
    norm1 = s1 * jax.lax.rsqrt(s1 + 1e-30)

    # Per-step phase, wrapped to [-pi, pi] around the expected advance
    # (matches torch: x - 2*pi*round(x/(2*pi)); a potential half-way rounding
    # flip only shifts the accumulated phase by 2*pi -> invisible after cos/sin).
    d = angle1 - angle0 - pa
    d = d - _TWO_PI * jnp.round(d * _INV_TWO_PI)
    phase = d + pa            # raw (unshifted) per-step phase

    # Init carry state on the first time tile of each (batch, freq) slice.
    @pl.when(t_idx == 0)
    def _():
        carry_ref[...] = jnp.zeros_like(carry_ref)
        prev_ref[...] = angle0[:, :1]      # phase_0: angle of source frame 0

    carry = carry_ref[...]    # (F_t, 1) running cumsum from previous tiles
    prev = prev_ref[...]      # (F_t, 1) value feeding lane 0 of this tile

    lane = jax.lax.broadcasted_iota(jnp.int32, phase.shape, 1)

    # torch.cat([phase_0, phase[..., :-1]]) == shift-right-by-1 with lane 0
    # replaced; XLU roll + one select instead of a concat copy.
    rolled = pltpu.roll(phase, shift=1, axis=1)
    phase_s = jnp.where(lane == 0, prev, rolled)

    # Save this tile's last raw phase for the next tile's lane 0.
    prev_ref[...] = phase[:, -1:]

    # Inclusive prefix-sum along lanes: Hillis-Steele scan built from XLU
    # rolls + masked adds (no zero-concat copies, f32-exact).
    acc = phase_s
    step = 1
    tlen = phase.shape[-1]
    while step < tlen:
        sh = pltpu.roll(acc, shift=step, axis=1)
        acc = acc + jnp.where(lane >= step, sh, 0.0)
        step *= 2

    acc = acc + carry
    carry_ref[...] = acc[:, -1:]

    mag = norm0 + alpha * (norm1 - norm0)
    out_re_ref[0] = mag * jnp.cos(acc)
    out_im_ref[0] = mag * jnp.sin(acc)


def phase_vocoder_pallas(x, rate, phase_advance):
    """x: (..., F, T, 2) float; returns (..., F, ceil(T/rate), 2) float32."""
    shape = x.shape
    F_, T, _ = shape[-3:]
    xb = x.reshape((-1, F_, T, 2)).astype(jnp.float32)
    B = xb.shape[0]

    # Static (compile-time) stretched time grid, mirrors torch.arange(0, T, rate).
    time_steps = np.arange(0.0, T, rate, dtype=np.float32)
    Tn = int(time_steps.shape[0])
    idx0 = time_steps.astype(np.int64)
    idx1 = (time_steps + 1.0).astype(np.int64)
    alphas = np.mod(time_steps, 1.0).astype(np.float32)

    # ---- tiling: lane-dense time tiles (multiple of 128), freq in <=2 tiles ----
    T_t = min(512, _round_up(Tn, 128))
    Tn_pad = _round_up(Tn, T_t)
    F_pad = _round_up(F_, 8)
    if F_pad >= 16:
        F_t = _round_up((F_pad + 1) // 2, 8)   # 2 freq tiles -> megacore work at small B
        F_pad = _round_up(F_pad, F_t)
    else:
        F_t = F_pad
    pad_f = F_pad - F_
    pad_t = Tn_pad - Tn

    # Padded lanes read the appended zero frames; their outputs are sliced off.
    idx0 = np.concatenate([idx0, np.full((pad_t,), T, np.int64)])
    idx1 = np.concatenate([idx1, np.full((pad_t,), T + 1, np.int64)])
    alphas = np.concatenate([alphas, np.zeros((pad_t,), np.float32)]).reshape(1, Tn_pad)

    # Pad freq, append 2 zero time frames, split real/imag planes, then do the
    # static-index frame gather (indices are compile-time constants).
    # TODO(synk): the idx0/idx1 gather and the final real/imag interleave stay
    # in XLA; an in-kernel lane gather from the raw (T+2) frames would halve
    # input HBM bytes but has no clean static-BlockSpec expression for general rate.
    xbp = jnp.pad(xb, ((0, 0), (0, pad_f), (0, 2), (0, 0)))
    xr = xbp[..., 0]
    xi = xbp[..., 1]
    r0 = xr[:, :, idx0]
    i0 = xi[:, :, idx0]
    r1 = xr[:, :, idx1]
    i1 = xi[:, :, idx1]

    pa = jnp.pad(jnp.asarray(phase_advance, jnp.float32).reshape(F_, 1),
                 ((0, pad_f), (0, 0)))
    alphas = jnp.asarray(alphas)

    grid = (B, F_pad // F_t, Tn_pad // T_t)
    bft = pl.BlockSpec((1, F_t, T_t), lambda b, f, t: (b, f, t))

    out_re, out_im = pl.pallas_call(
        _phase_vocoder_kernel,
        out_shape=(jax.ShapeDtypeStruct((B, F_pad, Tn_pad), jnp.float32),
                   jax.ShapeDtypeStruct((B, F_pad, Tn_pad), jnp.float32)),
        grid=grid,
        in_specs=[bft, bft, bft, bft,
                  pl.BlockSpec((F_t, 1), lambda b, f, t: (f, 0)),
                  pl.BlockSpec((1, T_t), lambda b, f, t: (0, t))],
        out_specs=(bft, bft),
        scratch_shapes=[pltpu.VMEM((F_t, 1), jnp.float32),   # cumsum carry
                        pltpu.VMEM((F_t, 1), jnp.float32)],  # prev raw phase
        compiler_params=pltpu.CompilerParams(
            dimension_semantics=("parallel", "parallel", "arbitrary")),
    )(r0, i0, r1, i1, pa, alphas)

    out = jnp.stack([out_re[:, :F_, :Tn], out_im[:, :F_, :Tn]], axis=-1)
    return out.reshape(shape[:-3] + (F_, Tn, 2))


class PitchShiftPallas:
    """Pallas port of the PyTorch PitchShift module."""

    def __init__(self, hop_length=None, n_freq=201, fixed_rate=None):
        self.fixed_rate = fixed_rate
        n_fft = (n_freq - 1) * 2
        hop_length = hop_length if hop_length is not None else n_fft // 2
        # Same as torch.linspace(0, pi*hop_length, n_freq)[..., None].
        self.phase_advance = jnp.linspace(
            0.0, math.pi * hop_length, n_freq, dtype=jnp.float32)[:, None]

    def __call__(self, complex_specgrams, overriding_rate=None):
        assert complex_specgrams.shape[-1] == 2, \
            "complex_specgrams should be a complex tensor, shape (..., complex=2)"
        rate = self.fixed_rate if overriding_rate is None else overriding_rate
        if rate is None:
            raise ValueError(
                "If no fixed_rate is specified, must pass a valid rate to forward.")
        if rate == 1.0:
            return complex_specgrams
        return phase_vocoder_pallas(complex_specgrams, rate, self.phase_advance)


def _phase_vocoder_ref(x, rate, phase_advance):
    """Pure-JAX reference mirroring torchaudio.functional.phase_vocoder."""
    shape = x.shape
    F_, T, _ = shape[-3:]
    xb = x.reshape((-1, F_, T, 2)).astype(jnp.float32)
    time_steps = np.arange(0.0, T, rate, dtype=np.float32)
    alphas = jnp.asarray(np.mod(time_steps, 1.0).astype(np.float32))
    idx0 = time_steps.astype(np.int64)
    idx1 = (time_steps + 1.0).astype(np.int64)
    xpad = jnp.pad(xb, ((0, 0), (0, 0), (0, 2), (0, 0)))
    s0 = xpad[:, :, idx0, :]
    s1 = xpad[:, :, idx1, :]
    phase0 = jnp.arctan2(xb[:, :, :1, 1], xb[:, :, :1, 0])
    a0 = jnp.arctan2(s0[..., 1], s0[..., 0])
    a1 = jnp.arctan2(s1[..., 1], s1[..., 0])
    n0 = jnp.sqrt(s0[..., 0] ** 2 + s0[..., 1] ** 2)
    n1 = jnp.sqrt(s1[..., 0] ** 2 + s1[..., 1] ** 2)
    phase = a1 - a0 - phase_advance
    phase = phase - _TWO_PI * jnp.round(phase / _TWO_PI)
    phase = phase + phase_advance
    phase = jnp.concatenate([phase0, phase[..., :-1]], axis=-1)
    phase_acc = jnp.cumsum(phase, axis=-1)
    mag = alphas * n1 + (1.0 - alphas) * n0
    out = jnp.stack([mag * jnp.cos(phase_acc), mag * jnp.sin(phase_acc)], axis=-1)
    return out.reshape(shape[:-3] + out.shape[1:])


if __name__ == "__main__":
    key = jax.random.PRNGKey(0)
    B, C, n_freq, T = 2, 4, 16, 16           # (..., freq, time, complex=2)
    rate = 1.25
    x = jax.random.normal(key, (B, C, n_freq, T, 2), dtype=jnp.float32)

    module = PitchShiftPallas(n_freq=n_freq, fixed_rate=rate)
    out = jax.block_until_ready(module(x))

    Tn = int(np.arange(0.0, T, rate, dtype=np.float32).shape[0])  # ceil(T/rate)
    assert out.shape == (B, C, n_freq, Tn, 2), out.shape
    assert out.dtype == jnp.float32

    ref = jax.block_until_ready(_phase_vocoder_ref(x, rate, module.phase_advance))
    np.testing.assert_allclose(np.asarray(out), np.asarray(ref), rtol=1e-2, atol=1e-2)

    print("KERNEL_OK")
</pallas_src>

<mosaic_0001>
module attributes {stable_mosaic.version = 11 : i64} {
  func.func @_phase_vocoder_kernel(%arg0: i32, %arg1: i32, %arg2: i32, %arg3: memref<1x8x128xf32, #tpu.memory_space<vmem>>, %arg4: memref<1x8x128xf32, #tpu.memory_space<vmem>>, %arg5: memref<1x8x128xf32, #tpu.memory_space<vmem>>, %arg6: memref<1x8x128xf32, #tpu.memory_space<vmem>>, %arg7: memref<8x1xf32, #tpu.memory_space<vmem>>, %arg8: memref<1x128xf32, #tpu.memory_space<vmem>>, %arg9: memref<1x8x128xf32, #tpu.memory_space<vmem>>, %arg10: memref<1x8x128xf32, #tpu.memory_space<vmem>>, %arg11: memref<8x1xf32, #tpu.memory_space<vmem>>, %arg12: memref<8x1xf32, #tpu.memory_space<vmem>>) attributes {dimension_semantics = [#tpu.dimension_semantics<parallel>, #tpu.dimension_semantics<parallel>, #tpu.dimension_semantics<arbitrary>], iteration_bounds = array<i64: 8, 2, 1>, scalar_prefetch = 0 : i64, scratch_operands = 2 : i64, tpu.core_type = #tpu.core_type<tc>, window_params = [{transform_indices = @transform_0, window_bounds = array<i64: 1, 8, 128>}, {transform_indices = @transform_1, window_bounds = array<i64: 1, 8, 128>}, {transform_indices = @transform_2, window_bounds = array<i64: 1, 8, 128>}, {transform_indices = @transform_3, window_bounds = array<i64: 1, 8, 128>}, {transform_indices = @transform_4, window_bounds = array<i64: 8, 1>}, {transform_indices = @transform_5, window_bounds = array<i64: 1, 128>}, {transform_indices = @transform_6, window_bounds = array<i64: 1, 8, 128>}, {transform_indices = @transform_7, window_bounds = array<i64: 1, 8, 128>}]} {
    %c0 = arith.constant 0 : index
    %c0_0 = arith.constant 0 : index
    %c0_1 = arith.constant 0 : index
    %0 = vector.load %arg3[%c0, %c0_0, %c0_1] : memref<1x8x128xf32, #tpu.memory_space<vmem>>, vector<1x8x128xf32>
    %1 = vector.shape_cast %0 : vector<1x8x128xf32> to vector<8x128xf32>
    %c0_2 = arith.constant 0 : index
    %c0_3 = arith.constant 0 : index
    %c0_4 = arith.constant 0 : index
    %2 = vector.load %arg4[%c0_2, %c0_3, %c0_4] : memref<1x8x128xf32, #tpu.memory_space<vmem>>, vector<1x8x128xf32>
    %3 = vector.shape_cast %2 : vector<1x8x128xf32> to vector<8x128xf32>
    %c0_5 = arith.constant 0 : index
    %c0_6 = arith.constant 0 : index
    %c0_7 = arith.constant 0 : index
    %4 = vector.load %arg5[%c0_5, %c0_6, %c0_7] : memref<1x8x128xf32, #tpu.memory_space<vmem>>, vector<1x8x128xf32>
    %5 = vector.shape_cast %4 : vector<1x8x128xf32> to vector<8x128xf32>
    %c0_8 = arith.constant 0 : index
    %c0_9 = arith.constant 0 : index
    %c0_10 = arith.constant 0 : index
    %6 = vector.load %arg6[%c0_8, %c0_9, %c0_10] : memref<1x8x128xf32, #tpu.memory_space<vmem>>, vector<1x8x128xf32>
    %7 = vector.shape_cast %6 : vector<1x8x128xf32> to vector<8x128xf32>
    %c0_11 = arith.constant 0 : index
    %c0_12 = arith.constant 0 : index
    %8 = vector.load %arg7[%c0_11, %c0_12] : memref<8x1xf32, #tpu.memory_space<vmem>>, vector<8x1xf32>
    %c0_13 = arith.constant 0 : index
    %c0_14 = arith.constant 0 : index
    %9 = vector.load %arg8[%c0_13, %c0_14] : memref<1x128xf32, #tpu.memory_space<vmem>>, vector<1x128xf32>
    %10 = math.atan2 %3, %1 : vector<8x128xf32>
    %11 = math.atan2 %7, %5 : vector<8x128xf32>
    %12 = arith.mulf %1, %1 : vector<8x128xf32>
    %13 = arith.mulf %3, %3 : vector<8x128xf32>
    %14 = arith.addf %12, %13 : vector<8x128xf32>
    %15 = arith.mulf %5, %5 : vector<8x128xf32>
    %16 = arith.mulf %7, %7 : vector<8x128xf32>
    %17 = arith.addf %15, %16 : vector<8x128xf32>
    %cst = arith.constant 1.000000e-30 : f32
    %18 = vector.broadcast %cst : f32 to vector<8x128xf32>
    %19 = arith.addf %14, %18 : vector<8x128xf32>
    %20 = math.rsqrt %19 : vector<8x128xf32>
    %21 = arith.mulf %14, %20 : vector<8x128xf32>
    %cst_15 = arith.constant 1.000000e-30 : f32
    %22 = vector.broadcast %cst_15 : f32 to vector<8x128xf32>
    %23 = arith.addf %17, %22 : vector<8x128xf32>
    %24 = math.rsqrt %23 : vector<8x128xf32>
    %25 = arith.mulf %17, %24 : vector<8x128xf32>
    %26 = arith.subf %11, %10 : vector<8x128xf32>
    %27 = vector.broadcast %8 : vector<8x1xf32> to vector<8x128xf32>
    %28 = arith.subf %26, %27 : vector<8x128xf32>
    %cst_16 = arith.constant 0.159154937 : f32
    %29 = vector.broadcast %cst_16 : f32 to vector<8x128xf32>
    %30 = arith.mulf %28, %29 : vector<8x128xf32>
    %31 = math.roundeven %30 : vector<8x128xf32>
    %cst_17 = arith.constant 6.28318548 : f32
    %32 = vector.broadcast %cst_17 : f32 to vector<8x128xf32>
    %33 = arith.mulf %32, %31 : vector<8x128xf32>
    %34 = arith.subf %28, %33 : vector<8x128xf32>
    %35 = vector.broadcast %8 : vector<8x1xf32> to vector<8x128xf32>
    %36 = arith.addf %34, %35 : vector<8x128xf32>
    %c0_i32 = arith.constant 0 : i32
    %37 = arith.cmpi eq, %arg2, %c0_i32 : i32
    %38 = arith.extui %37 : i1 to i32
    %c0_i32_18 = arith.constant 0 : i32
    %39 = arith.cmpi ne, %38, %c0_i32_18 : i32
    scf.if %39 {
      %cst_49 = arith.constant 0.000000e+00 : f32
      %111 = vector.broadcast %cst_49 : f32 to vector<8x1xf32>
      %c0_50 = arith.constant 0 : index
      %c0_51 = arith.constant 0 : index
      %112 = vector.load %arg11[%c0_50, %c0_51] : memref<8x1xf32, #tpu.memory_space<vmem>>, vector<8x1xf32>
      tpu.vector_store %arg11[%c0_50, %c0_51], %111 {strides = array<i32>} : memref<8x1xf32, #tpu.memory_space<vmem>>, vector<8x1xf32>,
      %113 = vector.extract_strided_slice %10 {offsets = [0, 0], sizes = [8, 1], strides = [1, 1]} : vector<8x128xf32> to vector<8x1xf32>
      %c0_52 = arith.constant 0 : index
      %c0_53 = arith.constant 0 : index
      %114 = vector.load %arg12[%c0_52, %c0_53] : memref<8x1xf32, #tpu.memory_space<vmem>>, vector<8x1xf32>
      tpu.vector_store %arg12[%c0_52, %c0_53], %113 {strides = array<i32>} : memref<8x1xf32, #tpu.memory_space<vmem>>, vector<8x1xf32>,
    } else {
    }
    %c0_19 = arith.constant 0 : index
    %c0_20 = arith.constant 0 : index
    %40 = vector.load %arg11[%c0_19, %c0_20] : memref<8x1xf32, #tpu.memory_space<vmem>>, vector<8x1xf32>
    %c0_21 = arith.constant 0 : index
    %c0_22 = arith.constant 0 : index
    %41 = vector.load %arg12[%c0_21, %c0_22] : memref<8x1xf32, #tpu.memory_space<vmem>>, vector<8x1xf32>
    %42 = tpu.iota {dimensions = array<i32: 1>} : vector<8x128xi32>
    %c1_i32 = arith.constant 1 : i32
    %43 = tpu.dynamic_rotate %36 by %c1_i32 dim 1 : vector<8x128xf32>, i32 -> vector<8x128xf32>
    %c0_i32_23 = arith.constant 0 : i32
    %44 = vector.broadcast %c0_i32_23 : i32 to vector<8x128xi32>
    %45 = arith.cmpi eq, %42, %44 : vector<8x128xi32>
    %46 = vector.shape_cast %41 : vector<8x1xf32> to vector<8x1xf32>
    %47 = vector.broadcast %46 : vector<8x1xf32> to vector<8x128xf32>
    %48 = arith.select %45, %47, %43 : vector<8x128xi1>, vector<8x128xf32>
    %49 = vector.extract_strided_slice %36 {offsets = [0, 127], sizes = [8, 1], strides = [1, 1]} : vector<8x128xf32> to vector<8x1xf32>
    %c0_24 = arith.constant 0 : index
    %c0_25 = arith.constant 0 : index
    %50 = vector.load %arg12[%c0_24, %c0_25] : memref<8x1xf32, #tpu.memory_space<vmem>>, vector<8x1xf32>
    tpu.vector_store %arg12[%c0_24, %c0_25], %49 {strides = array<i32>} : memref<8x1xf32, #tpu.memory_space<vmem>>, vector<8x1xf32>,
    %c1_i32_26 = arith.constant 1 : i32
    %51 = tpu.dynamic_rotate %48 by %c1_i32_26 dim 1 : vector<8x128xf32>, i32 -> vector<8x128xf32>
    %c1_i32_27 = arith.constant 1 : i32
    %52 = vector.broadcast %c1_i32_27 : i32 to vector<8x128xi32>
    %53 = arith.cmpi sge, %42, %52 : vector<8x128xi32>
    %cst_28 = arith.constant 0.000000e+00 : f32
    %54 = vector.broadcast %cst_28 : f32 to vector<8x128xf32>
    %55 = arith.select %53, %51, %54 : vector<8x128xi1>, vector<8x128xf32>
    %56 = arith.addf %48, %55 : vector<8x128xf32>
    %c2_i32 = arith.constant 2 : i32
    %57 = tpu.dynamic_rotate %56 by %c2_i32 dim 1 : vector<8x128xf32>, i32 -> vector<8x128xf32>
    %c2_i32_29 = arith.constant 2 : i32
    %58 = vector.broadcast %c2_i32_29 : i32 to vector<8x128xi32>
    %59 = arith.cmpi sge, %42, %58 : vector<8x128xi32>
    %cst_30 = arith.constant 0.000000e+00 : f32
    %60 = vector.broadcast %cst_30 : f32 to vector<8x128xf32>
    %61 = arith.select %59, %57, %60 : vector<8x128xi1>, vector<8x128xf32>
    %62 = arith.addf %56, %61 : vector<8x128xf32>
    %c4_i32 = arith.constant 4 : i32
    %63 = tpu.dynamic_rotate %62 by %c4_i32 dim 1 : vector<8x128xf32>, i32 -> vector<8x128xf32>
    %c4_i32_31 = arith.constant 4 : i32
    %64 = vector.broadcast %c4_i32_31 : i32 to vector<8x128xi32>
    %65 = arith.cmpi sge, %42, %64 : vector<8x128xi32>
    %cst_32 = arith.constant 0.000000e+00 : f32
    %66 = vector.broadcast %cst_32 : f32 to vector<8x128xf32>
    %67 = arith.select %65, %63, %66 : vector<8x128xi1>, vector<8x128xf32>
    %68 = arith.addf %62, %67 : vector<8x128xf32>
    %c8_i32 = arith.constant 8 : i32
    %69 = tpu.dynamic_rotate %68 by %c8_i32 dim 1 : vector<8x128xf32>, i32 -> vector<8x128xf32>
    %c8_i32_33 = arith.constant 8 : i32
    %70 = vector.broadcast %c8_i32_33 : i32 to vector<8x128xi32>
    %71 = arith.cmpi sge, %42, %70 : vector<8x128xi32>
    %cst_34 = arith.constant 0.000000e+00 : f32
    %72 = vector.broadcast %cst_34 : f32 to vector<8x128xf32>
    %73 = arith.select %71, %69, %72 : vector<8x128xi1>, vector<8x128xf32>
    %74 = arith.addf %68, %73 : vector<8x128xf32>
    %c16_i32 = arith.constant 16 : i32
    %75 = tpu.dynamic_rotate %74 by %c16_i32 dim 1 : vector<8x128xf32>, i32 -> vector<8x128xf32>
    %c16_i32_35 = arith.constant 16 : i32
    %76 = vector.broadcast %c16_i32_35 : i32 to vector<8x128xi32>
    %77 = arith.cmpi sge, %42, %76 : vector<8x128xi32>
    %cst_36 = arith.constant 0.000000e+00 : f32
    %78 = vector.broadcast %cst_36 : f32 to vector<8x128xf32>
    %79 = arith.select %77, %75, %78 : vector<8x128xi1>, vector<8x128xf32>
    %80 = arith.addf %74, %79 : vector<8x128xf32>
    %c32_i32 = arith.constant 32 : i32
    %81 = tpu.dynamic_rotate %80 by %c32_i32 dim 1 : vector<8x128xf32>, i32 -> vector<8x128xf32>
    %c32_i32_37 = arith.constant 32 : i32
    %82 = vector.broadcast %c32_i32_37 : i32 to vector<8x128xi32>
    %83 = arith.cmpi sge, %42, %82 : vector<8x128xi32>
    %cst_38 = arith.constant 0.000000e+00 : f32
    %84 = vector.broadcast %cst_38 : f32 to vector<8x128xf32>
    %85 = arith.select %83, %81, %84 : vector<8x128xi1>, vector<8x128xf32>
    %86 = arith.addf %80, %85 : vector<8x128xf32>
    %c64_i32 = arith.constant 64 : i32
    %87 = tpu.dynamic_rotate %86 by %c64_i32 dim 1 : vector<8x128xf32>, i32 -> vector<8x128xf32>
    %c64_i32_39 = arith.constant 64 : i32
    %88 = vector.broadcast %c64_i32_39 : i32 to vector<8x128xi32>
    %89 = arith.cmpi sge, %42, %88 : vector<8x128xi32>
    %cst_40 = arith.constant 0.000000e+00 : f32
    %90 = vector.broadcast %cst_40 : f32 to vector<8x128xf32>
    %91 = arith.select %89, %87, %90 : vector<8x128xi1>, vector<8x128xf32>
    %92 = arith.addf %86, %91 : vector<8x128xf32>
    %93 = vector.broadcast %40 : vector<8x1xf32> to vector<8x128xf32>
    %94 = arith.addf %92, %93 : vector<8x128xf32>
    %95 = vector.extract_strided_slice %94 {offsets = [0, 127], sizes = [8, 1], strides = [1, 1]} : vector<8x128xf32> to vector<8x1xf32>
    %c0_41 = arith.constant 0 : index
    %c0_42 = arith.constant 0 : index
    %96 = vector.load %arg11[%c0_41, %c0_42] : memref<8x1xf32, #tpu.memory_space<vmem>>, vector<8x1xf32>
    tpu.vector_store %arg11[%c0_41, %c0_42], %95 {strides = array<i32>} : memref<8x1xf32, #tpu.memory_space<vmem>>, vector<8x1xf32>,
    %97 = arith.subf %25, %21 : vector<8x128xf32>
    %98 = vector.broadcast %9 : vector<1x128xf32> to vector<8x128xf32>
    %99 = arith.mulf %98, %97 : vector<8x128xf32>
    %100 = arith.addf %21, %99 : vector<8x128xf32>
    %101 = math.cos %94 : vector<8x128xf32>
    %102 = arith.mulf %100, %101 : vector<8x128xf32>
    %c0_43 = arith.constant 0 : index
    %c0_44 = arith.constant 0 : index
    %c0_45 = arith.constant 0 : index
    %103 = vector.load %arg9[%c0_43, %c0_44, %c0_45] : memref<1x8x128xf32, #tpu.memory_space<vmem>>, vector<1x8x128xf32>
    %104 = vector.shape_cast %103 : vector<1x8x128xf32> to vector<8x128xf32>
    %105 = vector.shape_cast %102 : vector<8x128xf32> to vector<1x8x128xf32>
    tpu.vector_store %arg9[%c0_43, %c0_44, %c0_45], %105 {strides = array<i32>} : memref<1x8x128xf32, #tpu.memory_space<vmem>>, vector<1x8x128xf32>,
    %106 = math.sin %94 : vector<8x128xf32>
    %107 = arith.mulf %100, %106 : vector<8x128xf32>
    %c0_46 = arith.constant 0 : index
    %c0_47 = arith.constant 0 : index
    %c0_48 = arith.constant 0 : index
    %108 = vector.load %arg10[%c0_46, %c0_47, %c0_48] : memref<1x8x128xf32, #tpu.memory_space<vmem>>, vector<1x8x128xf32>
    %109 = vector.shape_cast %108 : vector<1x8x128xf32> to vector<8x128xf32>
    %110 = vector.shape_cast %107 : vector<8x128xf32> to vector<1x8x128xf32>
    tpu.vector_store %arg10[%c0_46, %c0_47, %c0_48], %110 {strides = array<i32>} : memref<1x8x128xf32, #tpu.memory_space<vmem>>, vector<1x8x128xf32>,
    return
  }
  func.func @transform_0(%arg0: i32, %arg1: i32, %arg2: i32) -> (i32, i32, i32) {
    %c0_i32 = arith.constant 0 : i32
    return %arg0, %arg1, %arg2 : i32, i32, i32
  }
  func.func @transform_1(%arg0: i32, %arg1: i32, %arg2: i32) -> (i32, i32, i32) {
    %c0_i32 = arith.constant 0 : i32
    return %arg0, %arg1, %arg2 : i32, i32, i32
  }
  func.func @transform_2(%arg0: i32, %arg1: i32, %arg2: i32) -> (i32, i32, i32) {
    %c0_i32 = arith.constant 0 : i32
    return %arg0, %arg1, %arg2 : i32, i32, i32
  }
  func.func @transform_3(%arg0: i32, %arg1: i32, %arg2: i32) -> (i32, i32, i32) {
    %c0_i32 = arith.constant 0 : i32
    return %arg0, %arg1, %arg2 : i32, i32, i32
  }
  func.func @transform_4(%arg0: i32, %arg1: i32, %arg2: i32) -> (i32, i32) {
    %c0_i32 = arith.constant 0 : i32
    %c0_i32_0 = arith.constant 0 : i32
    return %arg1, %c0_i32 : i32, i32
  }
  func.func @transform_5(%arg0: i32, %arg1: i32, %arg2: i32) -> (i32, i32) {
    %c0_i32 = arith.constant 0 : i32
    %c0_i32_0 = arith.constant 0 : i32
    return %c0_i32, %arg2 : i32, i32
  }
  func.func @transform_6(%arg0: i32, %arg1: i32, %arg2: i32) -> (i32, i32, i32) {
    %c0_i32 = arith.constant 0 : i32
    return %arg0, %arg1, %arg2 : i32, i32, i32
  }
  func.func @transform_7(%arg0: i32, %arg1: i32, %arg2: i32) -> (i32, i32, i32) {
    %c0_i32 = arith.constant 0 : i32
    return %arg0, %arg1, %arg2 : i32, i32, i32
  }
}

</mosaic_0001>

<llo_original>
// kernel: tpu_custom_call.1
$region0: #{tpu_custom_call.1}
  #allocation0 [shape = 'u32[]', space=smem, size = 0x4, offset = 0x4, fixed_abs, tag = 'smem constant byte address 0x4 - core index']
  #allocation1 [shape = 'u32[144,128]{1,0:T(1,128)}', space=vmem, size = 0x12000, scoped, tag = 'internal scratch']
  #allocation2 [shape = 'f32[8,1]{1,0:T(8,128)}', space=vmem, size = 0x1000, scoped, tag = 'scratch operand']
  #allocation3 [shape = 'f32[8,1]{1,0:T(8,128)}', space=vmem, size = 0x1000, scoped, tag = 'scratch operand']
  %s0 = inlined_call_operand.hbm [shape: f32[8,16,128], index: 0, kind: input, shape index: {}]
  %s1 = inlined_call_operand.hbm [shape: f32[8,16,128], index: 1, kind: input, shape index: {}]
  %s2 = inlined_call_operand.hbm [shape: f32[8,16,128], index: 2, kind: input, shape index: {}]
  %s3 = inlined_call_operand.hbm [shape: f32[8,16,128], index: 3, kind: input, shape index: {}]
  %s4 = inlined_call_operand.vmem [shape: f32[16,1], index: 4, kind: input, shape index: {}]
  %s5 = inlined_call_operand.vmem [shape: f32[1,128], index: 5, kind: input, shape index: {}]
  %s6 = inlined_call_operand.hbm [shape: f32[8,16,128], index: 6, kind: output, shape index: {0}]
  %s7 = inlined_call_operand.hbm [shape: f32[8,16,128], index: 7, kind: output, shape index: {1}]
  %8 = xla_tuple %s6, %s7
  %s9 = sld [smem:[#allocation0]]
  $region85: #{tpu_custom_call.1} parent=0
    _
  %s11 = ssub.s32 1, %s9
  %s12 = scalar_select 0, %s11, %s9
  $region1: #{tpu_custom_call.1} parent=0
    #allocation4 [shape = 'u8[8192]{0}', space=vmem, size = 0x2000, scoped, tag = 'input window, operand 0']
    #allocation5 [shape = 's32[2]{0}', space=sflag, size = 0x8, scoped, tag = 'scoped memory for tpu_custom_call.1']
    #allocation6 [shape = 's32[2]{0}', space=sflag, size = 0x8, scoped, tag = 'scoped memory for tpu_custom_call.1']
    #allocation7 [shape = 'u8[8192]{0}', space=vmem, size = 0x2000, scoped, tag = 'input window, operand 1']
    #allocation8 [shape = 's32[2]{0}', space=sflag, size = 0x8, scoped, tag = 'scoped memory for tpu_custom_call.1']
    #allocation9 [shape = 'u8[8192]{0}', space=vmem, size = 0x2000, scoped, tag = 'input window, operand 2']
    #allocation10 [shape = 'u8[8192]{0}', space=vmem, size = 0x2000, scoped, tag = 'input window, operand 3']
    #allocation11 [shape = 's32[2]{0}', space=sflag, size = 0x8, scoped, tag = 'scoped memory for tpu_custom_call.1']
    #allocation12 [shape = 'u8[8192]{0}', space=vmem, size = 0x2000, scoped, tag = 'output window, operand 0']
    #allocation13 [shape = 'u8[8192]{0}', space=vmem, size = 0x2000, scoped, tag = 'output window, operand 1']
    #allocation14 [shape = 's32[2]{0}', space=sflag, size = 0x8, scoped, tag = 'scoped memory for tpu_custom_call.1']
    %13 = vsyncpa [#allocation5], 0
    %s14 = scalar_lea.sflag [#allocation5], 1
    %15 = vsyncpa %s14, 0
    %16 = vsyncpa [#allocation8], 0
    %s17 = scalar_lea.sflag [#allocation8], 1
    %18 = vsyncpa %s17, 0
    %19 = vsyncpa [#allocation11], 0
    %s20 = scalar_lea.sflag [#allocation11], 1
    %21 = vsyncpa %s20, 0
    %22 = vsyncpa [#allocation6], 0
    %s23 = scalar_lea.sflag [#allocation6], 1
    %24 = vsyncpa %s23, 0
    %25 = vsyncpa [#allocation14], 0
    %s26 = scalar_lea.sflag [#allocation14], 1
    %27 = vsyncpa %s26, 0
    loop: start=0, step=1, limit=18
    $region2: #{tpu_custom_call.1} parent=1 // loop_pre_header
      _
    $region3: #{tpu_custom_call.1} parent=1 // loop_header
      %s29 = sphi 0, %s33
      %p30 = scmp.ge.s32.totalorder %s29, 18
      %s36 = sphi 0, %s55
      %s37 = sphi 0, %s51
      %s38 = sphi 0, %s47
      %s39 = sphi 0, %s36
      %s40 = sphi 0, %s37
      %s41 = sphi 0, %s38
      %s42 = sphi 0, %s39
      %s43 = sphi 0, %s40
      %s44 = sphi 0, %s41
      %s62 = sphi 0, %s64
      %s65 = sphi 0, %s62
      %s66 = sphi 0, %s65
      %s82 = sphi 0, %s66
      %s92 = sphi 0, %s94
      %s95 = sphi 0, %s92
      %s96 = sphi 0, %s95
      %s112 = sphi 0, %s96
      %s122 = sphi 0, %s124
      %s125 = sphi 0, %s122
      %s126 = sphi 0, %s125
      %s142 = sphi 0, %s126
      %s152 = sphi 0, %s154
      %s155 = sphi 0, %s152
      %s156 = sphi 0, %s155
      %s172 = sphi 0, %s156
      %s178 = sphi 0, %s180
      %s181 = sphi 0, %s178
      %s182 = sphi 0, %s181
      %s198 = sphi 0, %s182
      %s204 = sphi 0, %s206
      %s207 = sphi 0, %s204
      %s208 = sphi 0, %s207
      %s224 = sphi 0, %s208
      %s234 = sphi 0, %s236
      %s237 = sphi 0, %s234
      %s238 = sphi 0, %s237
      %s254 = sphi 0, %s238
      %s264 = sphi 0, %s266
      %s267 = sphi 0, %s264
      %s268 = sphi 0, %s267
      %s284 = sphi 0, %s268
    $region4: #{tpu_custom_call.1} parent=1 // loop_header_branch
      %32 = sbr.rel (%p30) target = $region8
    $region5: #{tpu_custom_call.1} parent=1 // loop_body
      %s34 = ssub.s32 %s29, 1
      %s35 = ssub.s32 %s29, 2
      %s45 = sadd.s32 1, %s38
      %p46 = scmp.ge.s32.totalorder %s45, 1
      %s47 = scalar_select %p46, 0, %s45
      %s48 = sadd.s32 1, %s37
      %s49 = scalar_select %p46, %s48, %s37
      %p50 = scmp.ge.s32.totalorder %s49, 2
      %s51 = scalar_select %p50, 0, %s49
      %s52 = sadd.s32 1, %s36
      %s53 = scalar_select %p50, %s52, %s36
      %p54 = scmp.ge.s32.totalorder %s53, 8
      %s55 = scalar_select %p54, 0, %s53
      %s56 = ssub.s32 %s36, %s55
      %s57 = ssub.s32 %s37, %s51
      %s58 = sor.u32 %s56, %s57
      %s59 = ssub.s32 %s38, %s47
      %s60 = sor.u32 %s58, %s59
      %p61 = scmp.eq.s32.totalorder %s60, 0
      %s63 = sadd.s32 %s62, 1
      %s64 = scalar_select %p61, %s62, %s63
      %p67 = pneg %p61
      %p68 = scmp.eq.s32.totalorder %s29, 15
      %p69 = por %p67, %p68
      %p70 = scmp.ne.s32.totalorder %s62, %s65
      %p71 = scmp.eq.s32.totalorder %s29, 0
      %p72 = por %p70, %p71
      %p73 = scmp.ne.s32.totalorder %s62, %s65
      %p74 = scmp.eq.s32.totalorder %s34, 15
      %p75 = por %p73, %p74
      %p76 = scmp.ne.s32.totalorder %s65, %s66
      %p77 = scmp.eq.s32.totalorder %s34, 0
      %p78 = por %p76, %p77
      %p79 = scmp.ne.s32.totalorder %s65, %s66
      %p80 = scmp.eq.s32.totalorder %s35, 15
      %p81 = por %p79, %p80
      %p83 = scmp.ne.s32.totalorder %s66, %s82
      %p84 = scmp.eq.s32.totalorder %s35, 0
      %p85 = por %p83, %p84
      %s86 = ssub.s32 %s36, %s55
      %s87 = ssub.s32 %s37, %s51
      %s88 = sor.u32 %s86, %s87
      %s89 = ssub.s32 %s38, %s47
      %s90 = sor.u32 %s88, %s89
      %p91 = scmp.eq.s32.totalorder %s90, 0
      %s93 = sadd.s32 %s92, 1
      %s94 = scalar_select %p91, %s92, %s93
      %p97 = pneg %p91
      %p98 = scmp.eq.s32.totalorder %s29, 15
      %p99 = por %p97, %p98
      %p100 = scmp.ne.s32.totalorder %s92, %s95
      %p101 = scmp.eq.s32.totalorder %s29, 0
      %p102 = por %p100, %p101
      %p103 = scmp.ne.s32.totalorder %s92, %s95
      %p104 = scmp.eq.s32.totalorder %s34, 15
      %p105 = por %p103, %p104
      %p106 = scmp.ne.s32.totalorder %s95, %s96
      %p107 = scmp.eq.s32.totalorder %s34, 0
      %p108 = por %p106, %p107
      %p109 = scmp.ne.s32.totalorder %s95, %s96
      %p110 = scmp.eq.s32.totalorder %s35, 15
      %p111 = por %p109, %p110
      %p113 = scmp.ne.s32.totalorder %s96, %s112
      %p114 = scmp.eq.s32.totalorder %s35, 0
      %p115 = por %p113, %p114
      %s116 = ssub.s32 %s36, %s55
      %s117 = ssub.s32 %s37, %s51
      %s118 = sor.u32 %s116, %s117
      %s119 = ssub.s32 %s38, %s47
      %s120 = sor.u32 %s118, %s119
      %p121 = scmp.eq.s32.totalorder %s120, 0
      %s123 = sadd.s32 %s122, 1
      %s124 = scalar_select %p121, %s122, %s123
      %p127 = pneg %p121
      %p128 = scmp.eq.s32.totalorder %s29, 15
      %p129 = por %p127, %p128
      %p130 = scmp.ne.s32.totalorder %s122, %s125
      %p131 = scmp.eq.s32.totalorder %s29, 0
      %p132 = por %p130, %p131
      %p133 = scmp.ne.s32.totalorder %s122, %s125
      %p134 = scmp.eq.s32.totalorder %s34, 15
      %p135 = por %p133, %p134
      %p136 = scmp.ne.s32.totalorder %s125, %s126
      %p137 = scmp.eq.s32.totalorder %s34, 0
      %p138 = por %p136, %p137
      %p139 = scmp.ne.s32.totalorder %s125, %s126
      %p140 = scmp.eq.s32.totalorder %s35, 15
      %p141 = por %p139, %p140
      %p143 = scmp.ne.s32.totalorder %s126, %s142
      %p144 = scmp.eq.s32.totalorder %s35, 0
      %p145 = por %p143, %p144
      %s146 = ssub.s32 %s36, %s55
      %s147 = ssub.s32 %s37, %s51
      %s148 = sor.u32 %s146, %s147
      %s149 = ssub.s32 %s38, %s47
      %s150 = sor.u32 %s148, %s149
      %p151 = scmp.eq.s32.totalorder %s150, 0
      %s153 = sadd.s32 %s152, 1
      %s154 = scalar_select %p151, %s152, %s153
      %p157 = pneg %p151
      %p158 = scmp.eq.s32.totalorder %s29, 15
      %p159 = por %p157, %p158
      %p160 = scmp.ne.s32.totalorder %s152, %s155
      %p161 = scmp.eq.s32.totalorder %s29, 0
      %p162 = por %p160, %p161
      %p163 = scmp.ne.s32.totalorder %s152, %s155
      %p164 = scmp.eq.s32.totalorder %s34, 15
      %p165 = por %p163, %p164
      %p166 = scmp.ne.s32.totalorder %s155, %s156
      %p167 = scmp.eq.s32.totalorder %s34, 0
      %p168 = por %p166, %p167
      %p169 = scmp.ne.s32.totalorder %s155, %s156
      %p170 = scmp.eq.s32.totalorder %s35, 15
      %p171 = por %p169, %p170
      %p173 = scmp.ne.s32.totalorder %s156, %s172
      %p174 = scmp.eq.s32.totalorder %s35, 0
      %p175 = por %p173, %p174
      %s176 = ssub.s32 %s37, %s51
      %p177 = scmp.eq.s32.totalorder %s176, 0
      %s179 = sadd.s32 %s178, 1
      %s180 = scalar_select %p177, %s178, %s179
      %p183 = pneg %p177
      %p184 = scmp.eq.s32.totalorder %s29, 15
      %p185 = por %p183, %p184
      %p186 = scmp.ne.s32.totalorder %s178, %s181
      %p187 = scmp.eq.s32.totalorder %s29, 0
      %p188 = por %p186, %p187
      %p189 = scmp.ne.s32.totalorder %s178, %s181
      %p190 = scmp.eq.s32.totalorder %s34, 15
      %p191 = por %p189, %p190
      %p192 = scmp.ne.s32.totalorder %s181, %s182
      %p193 = scmp.eq.s32.totalorder %s34, 0
      %p194 = por %p192, %p193
      %p195 = scmp.ne.s32.totalorder %s181, %s182
      %p196 = scmp.eq.s32.totalorder %s35, 15
      %p197 = por %p195, %p196
      %p199 = scmp.ne.s32.totalorder %s182, %s198
      %p200 = scmp.eq.s32.totalorder %s35, 0
      %p201 = por %p199, %p200
      %s202 = ssub.s32 %s38, %s47
      %p203 = scmp.eq.s32.totalorder %s202, 0
      %s205 = sadd.s32 %s204, 1
      %s206 = scalar_select %p203, %s204, %s205
      %p209 = pneg %p203
      %p210 = scmp.eq.s32.totalorder %s29, 15
      %p211 = por %p209, %p210
      %p212 = scmp.ne.s32.totalorder %s204, %s207
      %p213 = scmp.eq.s32.totalorder %s29, 0
      %p214 = por %p212, %p213
      %p215 = scmp.ne.s32.totalorder %s204, %s207
      %p216 = scmp.eq.s32.totalorder %s34, 15
      %p217 = por %p215, %p216
      %p218 = scmp.ne.s32.totalorder %s207, %s208
      %p219 = scmp.eq.s32.totalorder %s34, 0
      %p220 = por %p218, %p219
      %p221 = scmp.ne.s32.totalorder %s207, %s208
      %p222 = scmp.eq.s32.totalorder %s35, 15
      %p223 = por %p221, %p222
      %p225 = scmp.ne.s32.totalorder %s208, %s224
      %p226 = scmp.eq.s32.totalorder %s35, 0
      %p227 = por %p225, %p226
      %s228 = ssub.s32 %s36, %s55
      %s229 = ssub.s32 %s37, %s51
      %s230 = sor.u32 %s228, %s229
      %s231 = ssub.s32 %s38, %s47
      %s232 = sor.u32 %s230, %s231
      %p233 = scmp.eq.s32.totalorder %s232, 0
      %s235 = sadd.s32 %s234, 1
      %s236 = scalar_select %p233, %s234, %s235
      %p239 = pneg %p233
      %p240 = scmp.eq.s32.totalorder %s29, 15
      %p241 = por %p239, %p240
      %p242 = scmp.ne.s32.totalorder %s234, %s237
      %p243 = scmp.eq.s32.totalorder %s29, 0
      %p244 = por %p242, %p243
      %p245 = scmp.ne.s32.totalorder %s234, %s237
      %p246 = scmp.eq.s32.totalorder %s34, 15
      %p247 = por %p245, %p246
      %p248 = scmp.ne.s32.totalorder %s237, %s238
      %p249 = scmp.eq.s32.totalorder %s34, 0
      %p250 = por %p248, %p249
      %p251 = scmp.ne.s32.totalorder %s237, %s238
      %p252 = scmp.eq.s32.totalorder %s35, 15
      %p253 = por %p251, %p252
      %p255 = scmp.ne.s32.totalorder %s238, %s254
      %p256 = scmp.eq.s32.totalorder %s35, 0
      %p257 = por %p255, %p256
      %s258 = ssub.s32 %s36, %s55
      %s259 = ssub.s32 %s37, %s51
      %s260 = sor.u32 %s258, %s259
      %s261 = ssub.s32 %s38, %s47
      %s262 = sor.u32 %s260, %s261
      %p263 = scmp.eq.s32.totalorder %s262, 0
      %s265 = sadd.s32 %s264, 1
      %s266 = scalar_select %p263, %s264, %s265
      %p269 = pneg %p263
      %p270 = scmp.eq.s32.totalorder %s29, 15
      %p271 = por %p269, %p270
      %p272 = scmp.ne.s32.totalorder %s264, %s267
      %p273 = scmp.eq.s32.totalorder %s29, 0
      %p274 = por %p272, %p273
      %p275 = scmp.ne.s32.totalorder %s264, %s267
      %p276 = scmp.eq.s32.totalorder %s34, 15
      %p277 = por %p275, %p276
      %p278 = scmp.ne.s32.totalorder %s267, %s268
      %p279 = scmp.eq.s32.totalorder %s34, 0
      %p280 = por %p278, %p279
      %p281 = scmp.ne.s32.totalorder %s267, %s268
      %p282 = scmp.eq.s32.totalorder %s35, 15
      %p283 = por %p281, %p282
      %p285 = scmp.ne.s32.totalorder %s268, %s284
      %p286 = scmp.eq.s32.totalorder %s35, 0
      %p287 = por %p285, %p286
      %p288 = scmp.le.s32.totalorder 1, %s29
      %p289 = scmp.lt.s32.totalorder %s29, 17
      %p290 = pnand %p288, %p289
      %p291 = pneg %p290
      // Predicated region
      $region9: #{tpu_custom_call.1} parent=5 // pred_check
        _
      $region10: #{tpu_custom_call.1} parent=5 // pred_check_branch
        %293 = sbr.rel (%p290) target = $region12
      $region11: #{tpu_custom_call.1} parent=5 // pred_region
        %s294 = ssub.s32 %s29, 1
        // Predicated region
        $region13: #{tpu_custom_call.1} parent=11 // pred_check
          %p295 = pneg %p220
        $region14: #{tpu_custom_call.1} parent=11 // pred_check_branch
          %297 = sbr.rel (%p295) target = $region16
        $region15: #{tpu_custom_call.1} parent=11 // pred_region
          %p298 = scmp.lt.s32.totalorder %s41, 0
          %s299 = scalar_select %p298, %s41, 0
          %s300 = scalar_lea.vmem %s5, %s299
        $region16: #{tpu_custom_call.1} parent=11 // pred_fallthru
          _
      $region12: #{tpu_custom_call.1} parent=5 // pred_fallthru
        _
      %p301 = scmp.lt.s32.totalorder %s29, 16
      // Predicated region
      $region17: #{tpu_custom_call.1} parent=5 // pred_check
        %p302 = pneg %p301
      $region18: #{tpu_custom_call.1} parent=5 // pred_check_branch
        %304 = sbr.rel (%p302) target = $region20
      $region19: #{tpu_custom_call.1} parent=5 // pred_region
        // Predicated region
        $region21: #{tpu_custom_call.1} parent=19 // pred_check
          %p305 = pneg %p72
        $region22: #{tpu_custom_call.1} parent=19 // pred_check_branch
          %307 = sbr.rel (%p305) target = $region24
        $region23: #{tpu_custom_call.1} parent=19 // pred_region
          %s308 = sand.u32 %s62, 1
          %s309 = scalar_lea.sflag [#allocation5], %s308
          %s310 = sand.u32 %s62, 1
          %s311 = smul.addr %s310, 8
          %s312 = scalar_lea.vmem [#allocation4], %s311
          %s314 = ssub.s32 128, 128
          %315 = vsyncadd %s309, %s314
          %s316 = sadd.s32 %s38, %s37
          %s317 = smul.addr %s36, 2
          %s318 = sadd.s32 %s316, %s317
          %s319 = smul.addr %s318, 128
          %s320 = scalar_lea.hbm %s0, %s319
          %s322 = sshll.u32 %s312, 4
          %s323 = int_to_ptr.vmem [resolvable:$true] %s322
          %325 = dma.hbm_to_vmem [thread:$0]  %s320, 128, %s323, %s309
        $region24: #{tpu_custom_call.1} parent=19 // pred_fallthru
          _
        // Predicated region
        $region25: #{tpu_custom_call.1} parent=19 // pred_check
          %p326 = pneg %p102
        $region26: #{tpu_custom_call.1} parent=19 // pred_check_branch
          %328 = sbr.rel (%p326) target = $region28
        $region27: #{tpu_custom_call.1} parent=19 // pred_region
          %s329 = sand.u32 %s29, 1
          %s330 = scalar_lea.sflag [#allocation8], %s329
          %s331 = sand.u32 %s92, 1
          %s332 = smul.addr %s331, 8
          %s333 = scalar_lea.vmem [#allocation7], %s332
          %s335 = ssub.s32 128, 128
          %336 = vsyncadd %s330, %s335
          %s337 = sadd.s32 %s38, %s37
          %s338 = smul.addr %s36, 2
          %s339 = sadd.s32 %s337, %s338
          %s340 = smul.addr %s339, 128
          %s341 = scalar_lea.hbm %s1, %s340
          %s343 = sshll.u32 %s333, 4
          %s344 = int_to_ptr.vmem [resolvable:$true] %s343
          %346 = dma.hbm_to_vmem [thread:$0]  %s341, 128, %s344, %s330
        $region28: #{tpu_custom_call.1} parent=19 // pred_fallthru
          _
        // Predicated region
        $region29: #{tpu_custom_call.1} parent=19 // pred_check
          %p347 = pneg %p132
        $region30: #{tpu_custom_call.1} parent=19 // pred_check_branch
          %349 = sbr.rel (%p347) target = $region32
        $region31: #{tpu_custom_call.1} parent=19 // pred_region
          %s350 = sand.u32 %s29, 1
          %s351 = scalar_lea.sflag [#allocation8], %s350
          %s352 = sand.u32 %s122, 1
          %s353 = smul.addr %s352, 8
          %s354 = scalar_lea.vmem [#allocation9], %s353
          %s356 = ssub.s32 128, 128
          %357 = vsyncadd %s351, %s356
          %s358 = sadd.s32 %s38, %s37
          %s359 = smul.addr %s36, 2
          %s360 = sadd.s32 %s358, %s359
          %s361 = smul.addr %s360, 128
          %s362 = scalar_lea.hbm %s2, %s361
          %s364 = sshll.u32 %s354, 4
          %s365 = int_to_ptr.vmem [resolvable:$true] %s364
          %367 = dma.hbm_to_vmem [thread:$0]  %s362, 128, %s365, %s351
        $region32: #{tpu_custom_call.1} parent=19 // pred_fallthru
          _
        // Predicated region
        $region33: #{tpu_custom_call.1} parent=19 // pred_check
          %p368 = pneg %p162
        $region34: #{tpu_custom_call.1} parent=19 // pred_check_branch
          %370 = sbr.rel (%p368) target = $region36
        $region35: #{tpu_custom_call.1} parent=19 // pred_region
          %s371 = sand.u32 %s152, 1
          %s372 = scalar_lea.sflag [#allocation11], %s371
          %s373 = sand.u32 %s152, 1
          %s374 = smul.addr %s373, 8
          %s375 = scalar_lea.vmem [#allocation10], %s374
          %s377 = ssub.s32 128, 128
          %378 = vsyncadd %s372, %s377
          %s379 = sadd.s32 %s38, %s37
          %s380 = smul.addr %s36, 2
          %s381 = sadd.s32 %s379, %s380
          %s382 = smul.addr %s381, 128
          %s383 = scalar_lea.hbm %s3, %s382
          %s385 = sshll.u32 %s375, 4
          %s386 = int_to_ptr.vmem [resolvable:$true] %s385
          %388 = dma.hbm_to_vmem [thread:$0]  %s383, 128, %s386, %s372
        $region36: #{tpu_custom_call.1} parent=19 // pred_fallthru
          _
        // Predicated region
        $region37: #{tpu_custom_call.1} parent=19 // pred_check
          %p389 = pneg %p188
        $region38: #{tpu_custom_call.1} parent=19 // pred_check_branch
          %391 = sbr.rel (%p389) target = $region40
        $region39: #{tpu_custom_call.1} parent=19 // pred_region
          %p392 = scmp.lt.s32.totalorder %s37, 1
          %s393 = scalar_select %p392, %s37, 1
          %s394 = smul.addr %s393, 8
          %s395 = scalar_lea.vmem %s4, %s394
        $region40: #{tpu_custom_call.1} parent=19 // pred_fallthru
          _
      $region20: #{tpu_custom_call.1} parent=5 // pred_fallthru
        _
      %p396 = scmp.le.s32.totalorder 1, %s29
      %p397 = scmp.lt.s32.totalorder %s29, 17
      %p398 = pnand %p396, %p397
      %p399 = pneg %p398
      // Predicated region
      $region41: #{tpu_custom_call.1} parent=5 // pred_check
        _
      $region42: #{tpu_custom_call.1} parent=5 // pred_check_branch
        %401 = sbr.rel (%p398) target = $region44
      $region43: #{tpu_custom_call.1} parent=5 // pred_region
        %s402 = ssub.s32 %s29, 1
        %s403 = sand.u32 %s65, 1
        %s404 = scalar_lea.sflag [#allocation5], %s403
        %s405 = sand.u32 %s65, 1
        %s406 = smul.addr %s405, 8
        %s407 = scalar_lea.vmem [#allocation4], %s406
        // Predicated region
        $region45: #{tpu_custom_call.1} parent=43 // pred_check
          %p408 = pneg %p78
        $region46: #{tpu_custom_call.1} parent=43 // pred_check_branch
          %410 = sbr.rel (%p408) target = $region48
        $region47: #{tpu_custom_call.1} parent=43 // pred_region
          %411 = dma.done %s404, 128
        $region48: #{tpu_custom_call.1} parent=43 // pred_fallthru
          _
        %s412 = sand.u32 %s34, 1
        %s413 = scalar_lea.sflag [#allocation8], %s412
        %s414 = sand.u32 %s95, 1
        %s415 = smul.addr %s414, 8
        %s416 = scalar_lea.vmem [#allocation7], %s415
        // Predicated region
        $region49: #{tpu_custom_call.1} parent=43 // pred_check
          %p417 = pneg %p108
        $region50: #{tpu_custom_call.1} parent=43 // pred_check_branch
          %419 = sbr.rel (%p417) target = $region52
        $region51: #{tpu_custom_call.1} parent=43 // pred_region
          %420 = dma.done %s413, 128
        $region52: #{tpu_custom_call.1} parent=43 // pred_fallthru
          _
        %s421 = sand.u32 %s34, 1
        %s422 = scalar_lea.sflag [#allocation8], %s421
        %s423 = sand.u32 %s125, 1
        %s424 = smul.addr %s423, 8
        %s425 = scalar_lea.vmem [#allocation9], %s424
        // Predicated region
        $region53: #{tpu_custom_call.1} parent=43 // pred_check
          %p426 = pneg %p138
        $region54: #{tpu_custom_call.1} parent=43 // pred_check_branch
          %428 = sbr.rel (%p426) target = $region56
        $region55: #{tpu_custom_call.1} parent=43 // pred_region
          %429 = dma.done %s422, 128
        $region56: #{tpu_custom_call.1} parent=43 // pred_fallthru
          _
        %s430 = sand.u32 %s155, 1
        %s431 = scalar_lea.sflag [#allocation11], %s430
        %s432 = sand.u32 %s155, 1
        %s433 = smul.addr %s432, 8
        %s434 = scalar_lea.vmem [#allocation10], %s433
        // Predicated region
        $region57: #{tpu_custom_call.1} parent=43 // pred_check
          %p435 = pneg %p168
        $region58: #{tpu_custom_call.1} parent=43 // pred_check_branch
          %437 = sbr.rel (%p435) target = $region60
        $region59: #{tpu_custom_call.1} parent=43 // pred_region
          %438 = dma.done %s431, 128
        $region60: #{tpu_custom_call.1} parent=43 // pred_fallthru
          _
        %s439 = sand.u32 %s65, 1
        %s440 = scalar_lea.sflag [#allocation5], %s439
        %s441 = sand.u32 %s65, 1
        %s442 = smul.addr %s441, 8
        %s443 = scalar_lea.vmem [#allocation4], %s442
        %p444 = pneg %p78
        %p445 = pneg %p75
        %s446 = sand.u32 %s34, 1
        %s447 = scalar_lea.sflag [#allocation8], %s446
        %s448 = sand.u32 %s95, 1
        %s449 = smul.addr %s448, 8
        %s450 = scalar_lea.vmem [#allocation7], %s449
        %p451 = pneg %p108
        %p452 = pneg %p105
        %s453 = sand.u32 %s34, 1
        %s454 = scalar_lea.sflag [#allocation8], %s453
        %s455 = sand.u32 %s125, 1
        %s456 = smul.addr %s455, 8
        %s457 = scalar_lea.vmem [#allocation9], %s456
        %p458 = pneg %p138
        %p459 = pneg %p135
        %s460 = sand.u32 %s155, 1
        %s461 = scalar_lea.sflag [#allocation11], %s460
        %s462 = sand.u32 %s155, 1
        %s463 = smul.addr %s462, 8
        %s464 = scalar_lea.vmem [#allocation10], %s463
        %p465 = pneg %p168
        %p466 = pneg %p165
        %p467 = scmp.lt.s32.totalorder %s40, 1
        %s468 = scalar_select %p467, %s40, 1
        %s469 = smul.addr %s468, 8
        %s470 = scalar_lea.vmem %s4, %s469
        %p471 = pneg %p194
        %p472 = pneg %p191
        %p473 = scmp.lt.s32.totalorder %s41, 0
        %s474 = scalar_select %p473, %s41, 0
        %s475 = scalar_lea.vmem %s5, %s474
        %p476 = pneg %p220
        %p477 = pneg %p217
        %p478 = pneg %p250
        %p479 = pneg %p247
        %s480 = sand.u32 %s237, 1
        %s481 = scalar_lea.sflag [#allocation6], %s480
        %s482 = sand.u32 %s237, 1
        %s483 = smul.addr %s482, 8
        %s484 = scalar_lea.vmem [#allocation12], %s483
        %p485 = pneg %p280
        %p486 = pneg %p277
        %s487 = sand.u32 %s267, 1
        %s488 = scalar_lea.sflag [#allocation14], %s487
        %s489 = sand.u32 %s267, 1
        %s490 = smul.addr %s489, 8
        %s491 = scalar_lea.vmem [#allocation13], %s490
        %p492 = scmp.lt.s32.totalorder %s40, 1
        %s493 = scalar_select %p492, %s40, 1
        %s494 = smul.addr %s493, 8
        %s495 = scalar_lea.vmem %s4, %s494
        %p496 = scmp.lt.s32.totalorder %s41, 0
        %s497 = scalar_select %p496, %s41, 0
        %s498 = scalar_lea.vmem %s5, %s497
        %v499 = vld [vmem:[%s407] sm:$0xff]
        %v500 = vld [vmem:[%s416] sm:$0xff]
        %v501 = vld [vmem:[%s425] sm:$0xff]
        %v502 = vld [vmem:[%s434] sm:$0xff]
        %v503 = vld [vmem:[%s495] sm:$0xff]
        %v504 = vld [vmem:[%s498] sm:$0x1]
        %v505 = vand.u32 2147483647, %v499
        %v506 = vand.u32 2147483647, %v500
        %v507 = vmin.f32 %v505, %v506
        %v508 = vmax.f32 %v505, %v506
        %v509 = vrcp.pop %v508
        %v510 = vmul.f32 %v507, %v509
        %v511 = vmul.f32 %v510, %v510
        %v512 = vmul.f32 0.002785687, %v511
        %v513 = vadd.f32 %v512, -0.015866
        %v514 = vmul.f32 %v513, %v511
        %v515 = vadd.f32 %v514, 0.04247222
        %v516 = vmul.f32 %v515, %v511
        %v517 = vadd.f32 %v516, -0.074975304
        %v518 = vmul.f32 %v517, %v511
        %v519 = vadd.f32 %v518, 0.1064488
        %v520 = vmul.f32 %v519, %v511
        %v521 = vadd.f32 %v520, -0.14207031
        %v522 = vmul.f32 %v521, %v511
        %v523 = vadd.f32 %v522, 0.19993454
        %v524 = vmul.f32 %v523, %v511
        %v525 = vadd.f32 %v524, -0.33333147
        %v526 = vmul.f32 %v525, %v511
        %v527 = vmul.f32 %v526, %v510
        %v528 = vadd.f32 %v527, %v510
        %vm529 = vcmp.gt.f32.partialorder %v506, %v505
        %v530 = vsub.f32 1.5707964, %v528
        %v531 = vsel %vm529, %v530, %v528
        %vm532 = vcmp.lt.f32.partialorder %v499, 0.0
        %v533 = vsub.f32 3.1415927, %v531
        %v534 = vsel %vm532, %v533, %v531
        %vm535 = vcmp.lt.s32.totalorder %v499, 0
        %v536 = vsel %vm535, 3.1415927, 0.0
        %vm537 = vcmp.eq.f32.partialorder %v500, 0.0
        %v538 = vsel %vm537, %v536, %v534
        %vm539 = vcmp.ne.f32.partialorder %v499, %v499
        %vm540 = vcmp.ne.f32.partialorder %v500, %v500
        %vm541 = vmor %vm539, %vm540
        %v542 = vsel %vm541, nan, %v538
        %vm543 = vcmp.lt.f32.partialorder %v499, 0.0
        %v544 = vsel %vm543, 2.3561945, 0.7853982
        %vm545 = vcmp.eq.s32.totalorder %v505, inf
        %vm546 = vcmp.eq.s32.totalorder %v506, inf
        %vm547 = vmand %vm545, %vm546
        %v548 = vsel %vm547, %v544, %v542
        %v549 = vand.u32 2147483647, %v548
        %v550 = vand.u32 %v500, 2147483648
        %v551 = vor.u32 %v549, %v550
        %v552 = vand.u32 2147483647, %v501
        %v553 = vand.u32 2147483647, %v502
        %v554 = vmin.f32 %v552, %v553
        %v555 = vmax.f32 %v552, %v553
        %v556 = vrcp.pop %v555
        %v557 = vmul.f32 %v554, %v556
        %v558 = vmul.f32 %v557, %v557
        %v559 = vmul.f32 0.002785687, %v558
        %v560 = vadd.f32 %v559, -0.015866
        %v561 = vmul.f32 %v560, %v558
        %v562 = vadd.f32 %v561, 0.04247222
        %v563 = vmul.f32 %v562, %v558
        %v564 = vadd.f32 %v563, -0.074975304
        %v565 = vmul.f32 %v564, %v558
        %v566 = vadd.f32 %v565, 0.1064488
        %v567 = vmul.f32 %v566, %v558
        %v568 = vadd.f32 %v567, -0.14207031
        %v569 = vmul.f32 %v568, %v558
        %v570 = vadd.f32 %v569, 0.19993454
        %v571 = vmul.f32 %v570, %v558
        %v572 = vadd.f32 %v571, -0.33333147
        %v573 = vmul.f32 %v572, %v558
        %v574 = vmul.f32 %v573, %v557
        %v575 = vadd.f32 %v574, %v557
        %vm576 = vcmp.gt.f32.partialorder %v553, %v552
        %v577 = vsub.f32 1.5707964, %v575
        %v578 = vsel %vm576, %v577, %v575
        %vm579 = vcmp.lt.f32.partialorder %v501, 0.0
        %v580 = vsub.f32 3.1415927, %v578
        %v581 = vsel %vm579, %v580, %v578
        %vm582 = vcmp.lt.s32.totalorder %v501, 0
        %v583 = vsel %vm582, 3.1415927, 0.0
        %vm584 = vcmp.eq.f32.partialorder %v502, 0.0
        %v585 = vsel %vm584, %v583, %v581
        %vm586 = vcmp.ne.f32.partialorder %v501, %v501
        %vm587 = vcmp.ne.f32.partialorder %v502, %v502
        %vm588 = vmor %vm586, %vm587
        %v589 = vsel %vm588, nan, %v585
        %vm590 = vcmp.lt.f32.partialorder %v501, 0.0
        %v591 = vsel %vm590, 2.3561945, 0.7853982
        %vm592 = vcmp.eq.s32.totalorder %v552, inf
        %vm593 = vcmp.eq.s32.totalorder %v553, inf
        %vm594 = vmand %vm592, %vm593
        %v595 = vsel %vm594, %v591, %v589
        %v596 = vand.u32 2147483647, %v595
        %v597 = vand.u32 %v502, 2147483648
        %v598 = vor.u32 %v596, %v597
        %v599 = vmul.f32 %v499, %v499
        %v600 = vmul.f32 %v500, %v500
        %v601 = vadd.f32 %v599, %v600
        %v602 = vmul.f32 %v501, %v501
        %v603 = vmul.f32 %v502, %v502
        %v604 = vadd.f32 %v602, %v603
        %v605 = vadd.f32 %v601, 1e-30
        %v606 = vrsqrt.pop %v605
        %v607 = vmul.f32 %v601, %v606
        %v608 = vadd.f32 %v604, 1e-30
        %v609 = vrsqrt.pop %v608
        %v610 = vmul.f32 %v604, %v609
        %v611 = vsub.f32 %v598, %v551
        %613 = vset.pattern.permute.xlu0 0
        %614 = vperm.xlu0 %613, %v503
        %v615 = vpop.permute.xlu0 %614
        %v617 = vsub.f32 %v611, %v615
        %v618 = vmul.f32 %v617, 0.15915494
        %v619 = vround.ne.pseudo %v618
        %v620 = vmul.f32 %v619, 6.2831855
        %v621 = vsub.f32 %v617, %v620
        %v622 = vadd.f32 %v621, %v615
        %p623 = scmp.eq.s32.totalorder %s41, 0
        // Predicated region
        $region61: #{tpu_custom_call.1} parent=43 // pred_check
          %p624 = pneg %p623
        $region62: #{tpu_custom_call.1} parent=43 // pred_check_branch
          %626 = sbr.rel (%p624) target = $region64
        $region63: #{tpu_custom_call.1} parent=43 // pred_region
          %vm627 = vcmask 7168
          %628 = vst.msk [vmem:[#allocation2] sm:$0xff] %vm627, 0.0
          %629 = vst.msk [vmem:[#allocation3] sm:$0xff] %vm627, %v551
        $region64: #{tpu_custom_call.1} parent=43 // pred_fallthru
          _
        %v630 = vld [vmem:[#allocation2] sm:$0xff]
        %v631 = vld [vmem:[#allocation3] sm:$0xff]
        %v632 = vlaneseq
        %v633 = vand.u32 %v632, 127
        %634 = vrot.lane.b32.xlu0 %v622, 1
        %v635 = vpop.permute.xlu0 %634
        %vm636 = vcmp.eq.s32.totalorder %v633, 0
        %638 = vset.pattern.permute.xlu0 0
        %639 = vperm.xlu0 %638, %v631
        %v640 = vpop.permute.xlu0 %639
        %v642 = vsel %vm636, %v640, %v635
        %644 = vrot.lane.b32.xlu0 %v622, 1
        %v645 = vpop.permute.xlu0 %644
        %vm647 = vcmask 7168
        %648 = vst.msk [vmem:[#allocation3] sm:$0xff] %vm647, %v645
        %649 = vrot.lane.b32.xlu0 %v642, 1
        %v650 = vpop.permute.xlu0 %649
        %vm651 = vcmp.ge.s32.totalorder %v633, 1
        %v652 = vsel %vm651, %v650, 0.0
        %v653 = vadd.f32 %v642, %v652
        %654 = vrot.lane.b32.xlu0 %v653, 2
        %v655 = vpop.permute.xlu0 %654
        %vm656 = vcmp.ge.s32.totalorder %v633, 2
        %v657 = vsel %vm656, %v655, 0.0
        %v658 = vadd.f32 %v653, %v657
        %659 = vrot.lane.b32.xlu0 %v658, 4
        %v660 = vpop.permute.xlu0 %659
        %vm661 = vcmp.ge.s32.totalorder %v633, 4
        %v662 = vsel %vm661, %v660, 0.0
        %v663 = vadd.f32 %v658, %v662
        %664 = vrot.lane.b32.xlu0 %v663, 8
        %v665 = vpop.permute.xlu0 %664
        %vm666 = vcmp.ge.s32.totalorder %v633, 8
        %v667 = vsel %vm666, %v665, 0.0
        %v668 = vadd.f32 %v663, %v667
        %669 = vrot.lane.b32.xlu0 %v668, 16
        %v670 = vpop.permute.xlu0 %669
        %vm671 = vcmp.ge.s32.totalorder %v633, 16
        %v672 = vsel %vm671, %v670, 0.0
        %v673 = vadd.f32 %v668, %v672
        %674 = vrot.lane.b32.xlu0 %v673, 32
        %v675 = vpop.permute.xlu0 %674
        %vm676 = vcmp.ge.s32.totalorder %v633, 32
        %v677 = vsel %vm676, %v675, 0.0
        %v678 = vadd.f32 %v673, %v677
        %679 = vrot.lane.b32.xlu0 %v678, 64
        %v680 = vpop.permute.xlu0 %679
        %vm681 = vcmp.ge.s32.totalorder %v633, 64
        %v682 = vsel %vm681, %v680, 0.0
        %v683 = vadd.f32 %v678, %v682
        %685 = vset.pattern.permute.xlu0 0
        %686 = vperm.xlu0 %685, %v630
        %v687 = vpop.permute.xlu0 %686
        %v689 = vadd.f32 %v683, %v687
        %691 = vrot.lane.b32.xlu0 %v689, 1
        %v692 = vpop.permute.xlu0 %691
        %694 = vst.msk [vmem:[#allocation2] sm:$0xff] %vm647, %v692
        %v695 = vsub.f32 %v610, %v607
        %v697 = vlaneseq
        %v698 = vshrl.u32 %v697, 7
        %v699 = vsub.s32 0, %v698
        %v700 = vrot.slane %v504, %v699
        %v702 = vmul.f32 %v700, %v695
        %v703 = vadd.f32 %v607, %v702
        %v704 = vand.u32 2147483647, %v689
        %vm705 = vcmp.le.f32.partialorder %v704, 0.7853982
        %vm706 = vcmp.lt.s32.totalorder %v689, 0
        %v707 = vand.u32 %v689, 2139095040
        %v708 = vshrl.u32 %v707, 23
        %v709 = vsub.s32 %v708, 127
        %v710 = vand.u32 2147483647, %v689
        %v711 = vand.u32 %v710, 8388607
        %v712 = vor.u32 %v711, 8388608
        %v713 = vsub.s32 0, %v712
        %v714 = vadd.s32 %v709, 1
        %vm715 = vcmp.gt.s32.totalorder %v714, 0
        %v716 = vsel %vm715, %v714, 0
        %v717 = vshrl.u32 %v716, 5
        %v718 = vand.u32 %v716, 31
        %v719 = vsub.s32 32, %v718
        %v720 = vshrl.u32 683565275, %v719
        %v721 = vshll.u32 683565275, %v718
        %v722 = vshrl.u32 2475754826, %v719
        %v723 = vor.u32 %v721, %v722
        %v724 = vshll.u32 2475754826, %v718
        %v725 = vshrl.u32 2131351028, %v719
        %v726 = vor.u32 %v724, %v725
        %v727 = vshll.u32 2131351028, %v718
        %v728 = vshrl.u32 2102212464, %v719
        %v729 = vor.u32 %v727, %v728
        %v730 = vshll.u32 2102212464, %v718
        %v731 = vshrl.u32 920167782, %v719
        %v732 = vor.u32 %v730, %v731
        %v733 = vshll.u32 920167782, %v718
        %v734 = vshrl.u32 1326507024, %v719
        %v735 = vor.u32 %v733, %v734
        %vm736 = vcmp.lt.s32.totalorder %v717, 1
        %vm737 = vcmp.lt.s32.totalorder %v717, 2
        %vm738 = vcmp.lt.s32.totalorder %v717, 3
        %vm739 = vcmp.lt.s32.totalorder %v717, 4
        %v740 = vsel %vm736, %v720, %v723
        %v741 = vsel %vm739, %v729, 2102212464
        %v742 = vsel %vm738, %v726, %v741
        %v743 = vsel %vm737, %v740, %v742
        %v744 = vsel %vm736, %v723, %v726
        %v745 = vsel %vm739, %v732, 920167782
        %v746 = vsel %vm738, %v729, %v745
        %v747 = vsel %vm737, %v744, %v746
        %v748 = vsel %vm736, %v726, %v729
        %v749 = vsel %vm739, %v735, 1326507024
        %v750 = vsel %vm738, %v732, %v749
        %v751 = vsel %vm737, %v748, %v750
        %v752 = vshll.u32 %v712, 8
        %v753 = vmul.u32.u64.compose %v752, %v751
        %v754 = vextract.low.u32 %v753
        %v755 = vextract.high.u32 %v753
        %v756 = vmul.u32.u64.compose %v752, %v747
        %v757 = vextract.low.u32 %v756
        %v758 = vextract.high.u32 %v756
        %v759 = vmul.u32 %v752, %v743
        %v760 = vadd.s32 %v755, %v757
        %vm761 = vc.u32 %v755, %v757
        %v762 = vadd.s32 %v758, 1
        %v763 = vsel %vm761, %v762, %v758
        %v764 = vadd.s32 %v759, %v763
        %v765 = vadd.s32 %v764, 536870912
        %v766 = vshrl.u32 %v765, 30
        %v767 = vshll.u32 %v766, 30
        %v768 = vsub.s32 %v764, %v767
        %vm769 = vcmp.lt.s32.totalorder %v768, 0
        %v770 = vsub.s32 0, %v768
        %v771 = vsel %vm769, %v770, %v768
        %v772 = vclz %v771
        %v773 = vsub.s32 %v772, 2
        %vm774 = vcmp.gt.s32.totalorder 0, %v773
        %v775 = vsel %vm774, 0, %v773
        %v776 = vsub.s32 32, %v775
        %v777 = vshll.u32 %v768, %v775
        %v778 = vshrl.u32 %v760, %v776
        %v779 = vor.u32 %v777, %v778
        %v780 = vsub.s32 4294967266, %v775
        %v781 = vadd.s32 %v780, 127
        %v782 = vshll.u32 %v781, 23
        %v783 = vor.u32 4788187, %v782
        %v784 = vand.u32 2147483647, %v783
        %v786 = vcvt.s32.f32 %v779
        %v787 = vmul.f32 %v786, %v784
        %v788 = vxor.u32 %v787, 2147483648
        %v789 = vsel %vm706, %v788, %v787
        %v790 = vsub.s32 4, %v766
        %v791 = vsel %vm706, %v790, %v766
        %v792 = vsel %vm705, %v689, %v789
        %v793 = vsel %vm705, 0, %v791
        %v794 = vcosq.f32.pop %v792
        %v795 = vsinq.f32.pop %v792
        %vm796 = vweird.f32 %v689
        %v797 = vand.u32 %v793, 3
        %vm798 = vcmp.lt.s32.totalorder %v797, 2
        %vm799 = vcmp.eq.s32.totalorder %v797, 0
        %v800 = vxor.u32 %v795, 2147483648
        %v801 = vsel %vm799, %v794, %v800
        %vm802 = vcmp.eq.s32.totalorder %v797, 2
        %v803 = vxor.u32 %v794, 2147483648
        %v804 = vsel %vm802, %v803, %v795
        %v805 = vsel %vm798, %v801, %v804
        %v806 = vsel %vm796, nan, %v805
        %v807 = vmul.f32 %v703, %v806
        %808 = vst [vmem:[%s484] sm:$0xff] %v807
        %v809 = vand.u32 2147483647, %v689
        %vm810 = vcmp.le.f32.partialorder %v809, 0.7853982
        %vm811 = vcmp.lt.s32.totalorder %v689, 0
        %v812 = vand.u32 %v689, 2139095040
        %v813 = vshrl.u32 %v812, 23
        %v814 = vsub.s32 %v813, 127
        %v815 = vand.u32 2147483647, %v689
        %v816 = vand.u32 %v815, 8388607
        %v817 = vor.u32 %v816, 8388608
        %v818 = vsub.s32 0, %v817
        %v819 = vadd.s32 %v814, 1
        %vm820 = vcmp.gt.s32.totalorder %v819, 0
        %v821 = vsel %vm820, %v819, 0
        %v822 = vshrl.u32 %v821, 5
        %v823 = vand.u32 %v821, 31
        %v824 = vsub.s32 32, %v823
        %v825 = vshrl.u32 683565275, %v824
        %v826 = vshll.u32 683565275, %v823
        %v827 = vshrl.u32 2475754826, %v824
        %v828 = vor.u32 %v826, %v827
        %v829 = vshll.u32 2475754826, %v823
        %v830 = vshrl.u32 2131351028, %v824
        %v831 = vor.u32 %v829, %v830
        %v832 = vshll.u32 2131351028, %v823
        %v833 = vshrl.u32 2102212464, %v824
        %v834 = vor.u32 %v832, %v833
        %v835 = vshll.u32 2102212464, %v823
        %v836 = vshrl.u32 920167782, %v824
        %v837 = vor.u32 %v835, %v836
        %v838 = vshll.u32 920167782, %v823
        %v839 = vshrl.u32 1326507024, %v824
        %v840 = vor.u32 %v838, %v839
        %vm841 = vcmp.lt.s32.totalorder %v822, 1
        %vm842 = vcmp.lt.s32.totalorder %v822, 2
        %vm843 = vcmp.lt.s32.totalorder %v822, 3
        %vm844 = vcmp.lt.s32.totalorder %v822, 4
        %v845 = vsel %vm841, %v825, %v828
        %v846 = vsel %vm844, %v834, 2102212464
        %v847 = vsel %vm843, %v831, %v846
        %v848 = vsel %vm842, %v845, %v847
        %v849 = vsel %vm841, %v828, %v831
        %v850 = vsel %vm844, %v837, 920167782
        %v851 = vsel %vm843, %v834, %v850
        %v852 = vsel %vm842, %v849, %v851
        %v853 = vsel %vm841, %v831, %v834
        %v854 = vsel %vm844, %v840, 1326507024
        %v855 = vsel %vm843, %v837, %v854
        %v856 = vsel %vm842, %v853, %v855
        %v857 = vshll.u32 %v817, 8
        %v858 = vmul.u32.u64.compose %v857, %v856
        %v859 = vextract.low.u32 %v858
        %v860 = vextract.high.u32 %v858
        %v861 = vmul.u32.u64.compose %v857, %v852
        %v862 = vextract.low.u32 %v861
        %v863 = vextract.high.u32 %v861
        %v864 = vmul.u32 %v857, %v848
        %v865 = vadd.s32 %v860, %v862
        %vm866 = vc.u32 %v860, %v862
        %v867 = vadd.s32 %v863, 1
        %v868 = vsel %vm866, %v867, %v863
        %v869 = vadd.s32 %v864, %v868
        %v870 = vadd.s32 %v869, 536870912
        %v871 = vshrl.u32 %v870, 30
        %v872 = vshll.u32 %v871, 30
        %v873 = vsub.s32 %v869, %v872
        %vm874 = vcmp.lt.s32.totalorder %v873, 0
        %v875 = vsub.s32 0, %v873
        %v876 = vsel %vm874, %v875, %v873
        %v877 = vclz %v876
        %v878 = vsub.s32 %v877, 2
        %vm879 = vcmp.gt.s32.totalorder 0, %v878
        %v880 = vsel %vm879, 0, %v878
        %v881 = vsub.s32 32, %v880
        %v882 = vshll.u32 %v873, %v880
        %v883 = vshrl.u32 %v865, %v881
        %v884 = vor.u32 %v882, %v883
        %v885 = vsub.s32 4294967266, %v880
        %v886 = vadd.s32 %v885, 127
        %v887 = vshll.u32 %v886, 23
        %v888 = vor.u32 4788187, %v887
        %v889 = vand.u32 2147483647, %v888
        %v891 = vcvt.s32.f32 %v884
        %v892 = vmul.f32 %v891, %v889
        %v893 = vxor.u32 %v892, 2147483648
        %v894 = vsel %vm811, %v893, %v892
        %v895 = vsub.s32 4, %v871
        %v896 = vsel %vm811, %v895, %v871
        %v897 = vsel %vm810, %v689, %v894
        %v898 = vsel %vm810, 0, %v896
        %v899 = vcosq.f32.pop %v897
        %v900 = vsinq.f32.pop %v897
        %vm901 = vweird.f32 %v689
        %v902 = vadd.s32 %v898, 3
        %v903 = vand.u32 %v902, 3
        %vm904 = vcmp.lt.s32.totalorder %v903, 2
        %vm905 = vcmp.eq.s32.totalorder %v903, 0
        %v906 = vxor.u32 %v900, 2147483648
        %v907 = vsel %vm905, %v899, %v906
        %vm908 = vcmp.eq.s32.totalorder %v903, 2
        %v909 = vxor.u32 %v899, 2147483648
        %v910 = vsel %vm908, %v909, %v900
        %v911 = vsel %vm904, %v907, %v910
        %v912 = vsel %vm901, nan, %v911
        %v913 = vmul.f32 %v703, %v912
        %914 = vst [vmem:[%s491] sm:$0xff] %v913
        %s915 = sand.u32 %s237, 1
        %s916 = scalar_lea.sflag [#allocation6], %s915
        %s917 = sand.u32 %s237, 1
        %s918 = smul.addr %s917, 8
        %s919 = scalar_lea.vmem [#allocation12], %s918
        %s920 = sand.u32 %s267, 1
        %s921 = scalar_lea.sflag [#allocation14], %s920
        %s922 = sand.u32 %s267, 1
        %s923 = smul.addr %s922, 8
        %s924 = scalar_lea.vmem [#allocation13], %s923
        // Predicated region
        $region65: #{tpu_custom_call.1} parent=43 // pred_check
          %p925 = pneg %p247
        $region66: #{tpu_custom_call.1} parent=43 // pred_check_branch
          %927 = sbr.rel (%p925) target = $region68
        $region67: #{tpu_custom_call.1} parent=43 // pred_region
          %s929 = ssub.s32 128, 128
          %930 = vsyncadd %s916, %s929
          %s931 = sadd.s32 %s41, %s40
          %s932 = smul.addr %s39, 2
          %s933 = sadd.s32 %s931, %s932
          %s934 = smul.addr %s933, 128
          %s935 = scalar_lea.hbm %s6, %s934
          %s937 = sshll.u32 %s919, 4
          %s938 = int_to_ptr.vmem [resolvable:$true] %s937
          %940 = dma.vmem_to_hbm [thread:$0]  %s938, 128, %s935, %s916
        $region68: #{tpu_custom_call.1} parent=43 // pred_fallthru
          _
        // Predicated region
        $region69: #{tpu_custom_call.1} parent=43 // pred_check
          %p941 = pneg %p277
        $region70: #{tpu_custom_call.1} parent=43 // pred_check_branch
          %943 = sbr.rel (%p941) target = $region72
        $region71: #{tpu_custom_call.1} parent=43 // pred_region
          %s945 = ssub.s32 128, 128
          %946 = vsyncadd %s921, %s945
          %s947 = sadd.s32 %s41, %s40
          %s948 = smul.addr %s39, 2
          %s949 = sadd.s32 %s947, %s948
          %s950 = smul.addr %s949, 128
          %s951 = scalar_lea.hbm %s7, %s950
          %s953 = sshll.u32 %s924, 4
          %s954 = int_to_ptr.vmem [resolvable:$true] %s953
          %956 = dma.vmem_to_hbm [thread:$0]  %s954, 128, %s951, %s921
        $region72: #{tpu_custom_call.1} parent=43 // pred_fallthru
          _
      $region44: #{tpu_custom_call.1} parent=5 // pred_fallthru
        _
      %p957 = scmp.le.s32.totalorder 2, %s29
      // Predicated region
      $region73: #{tpu_custom_call.1} parent=5 // pred_check
        %p958 = pneg %p957
      $region74: #{tpu_custom_call.1} parent=5 // pred_check_branch
        %960 = sbr.rel (%p958) target = $region76
      $region75: #{tpu_custom_call.1} parent=5 // pred_region
        %s961 = ssub.s32 %s29, 2
        // Predicated region
        $region77: #{tpu_custom_call.1} parent=75 // pred_check
          %p962 = pneg %p253
        $region78: #{tpu_custom_call.1} parent=75 // pred_check_branch
          %964 = sbr.rel (%p962) target = $region80
        $region79: #{tpu_custom_call.1} parent=75 // pred_region
          %s965 = sand.u32 %s238, 1
          %s966 = scalar_lea.sflag [#allocation6], %s965
          %s967 = sand.u32 %s238, 1
          %s968 = smul.addr %s967, 8
          %s969 = scalar_lea.vmem [#allocation12], %s968
          %970 = dma.done %s966, 128
        $region80: #{tpu_custom_call.1} parent=75 // pred_fallthru
          _
        // Predicated region
        $region81: #{tpu_custom_call.1} parent=75 // pred_check
          %p971 = pneg %p283
        $region82: #{tpu_custom_call.1} parent=75 // pred_check_branch
          %973 = sbr.rel (%p971) target = $region84
        $region83: #{tpu_custom_call.1} parent=75 // pred_region
          %s974 = sand.u32 %s268, 1
          %s975 = scalar_lea.sflag [#allocation14], %s974
          %s976 = sand.u32 %s268, 1
          %s977 = smul.addr %s976, 8
          %s978 = scalar_lea.vmem [#allocation13], %s977
          %979 = dma.done %s975, 128
        $region84: #{tpu_custom_call.1} parent=75 // pred_fallthru
          _
      $region76: #{tpu_custom_call.1} parent=5 // pred_fallthru
        _
    $region6: #{tpu_custom_call.1} parent=1 // loop_footer
      %s33 = sadd.s32 1, %s29
    $region7: #{tpu_custom_call.1} parent=1 // loop_footer_branch
      %28 = sbr.rel target = $region3
    $region8: #{tpu_custom_call.1} parent=1 // loop_exit
      _
    %980 = vsyncpa [#allocation5], 1
    %s981 = scalar_lea.sflag [#allocation5], 1
    %982 = vsyncpa %s981, 1
    %983 = vsyncpa [#allocation8], 1
    %s984 = scalar_lea.sflag [#allocation8], 1
    %985 = vsyncpa %s984, 1
    %986 = vsyncpa [#allocation11], 1
    %s987 = scalar_lea.sflag [#allocation11], 1
    %988 = vsyncpa %s987, 1
    %989 = vsyncpa [#allocation6], 1
    %s990 = scalar_lea.sflag [#allocation6], 1
    %991 = vsyncpa %s990, 1
    %992 = vsyncpa [#allocation14], 1
    %s993 = scalar_lea.sflag [#allocation14], 1
    %994 = vsyncpa %s993, 1

</llo_original>
